<compile_context>
chip_gen: v6e
topology: v6e:2x2x1
jax: 0.10.0
libtpu: 0.0.40
codegen_flags: <defaults>
</compile_context>

<pallas_src>
import functools

import jax
import jax.numpy as jnp
from jax.experimental import pallas as pl
from jax.experimental.pallas import tpu as pltpu


def _category_kernel(x_ref, w_ref, o_ref):
    """One batch tile: out = x_tile @ W_eff.

    x_ref : VMEM (bt, n_objects)   input batch tile
    w_ref : VMEM (n_objects, D)    pre-combined effective projection (grid-invariant)
    o_ref : VMEM (bt, D)           output batch tile
    """
    o_ref[...] = jnp.dot(
        x_ref[...], w_ref[...], preferred_element_type=jnp.float32
    ).astype(o_ref.dtype)


def category_theory_forward(
    x,
    object_embeddings,
    morphism_matrices,
    functor_weights,
    *,
    batch_tile=8192,
    out_dtype=None,
):
    """JAX wrapper around the fused Pallas kernel."""
    B, n_objects = x.shape
    n_morphisms, D, D2 = morphism_matrices.shape
    assert D == D2
    assert object_embeddings.shape == (n_objects, D)

    out_dtype = x.dtype if out_dtype is None else out_dtype

    # --- grid-invariant hoist (tiny; done once by XLA, not per tile) --------
    w = jax.nn.softmax(functor_weights.astype(jnp.float32), axis=0)
    mc = jnp.einsum(
        "m,mij->ij", w, morphism_matrices.astype(jnp.float32)
    )  # (D, D)
    w_eff = jnp.dot(
        object_embeddings.astype(jnp.float32), mc,
        preferred_element_type=jnp.float32,
    ).astype(x.dtype)  # (n_objects, D)

    # --- batch tiling -------------------------------------------------------
    itemsize = jnp.dtype(x.dtype).itemsize
    out_itemsize = jnp.dtype(out_dtype).itemsize
    # sublane packing: 8 rows for 32-bit, 16 for 16-bit dtypes
    row_align = 16 if min(itemsize, out_itemsize) == 2 else 8

    bt = min(batch_tile, B)
    bt = ((bt + row_align - 1) // row_align) * row_align
    # Cap so the double-buffered x + out tiles stay under ~24 MiB
    # (safe under the v7x 32 MiB default scoped VMEM limit with headroom).
    per_row_bytes = n_objects * itemsize + D * out_itemsize
    max_bt = (24 * 1024 * 1024) // (2 * per_row_bytes)
    max_bt = max(row_align, (max_bt // row_align) * row_align)
    bt = min(bt, max_bt)

    Bp = ((B + bt - 1) // bt) * bt
    if Bp != B:
        x = jnp.pad(x, ((0, Bp - B), (0, 0)))
    n_tiles = Bp // bt

    # --- cost estimate (single matmul per tile) -----------------------------
    flops = 2 * Bp * n_objects * D
    bytes_accessed = (
        Bp * n_objects * itemsize          # x read
        + n_objects * D * itemsize         # W_eff (fetched once)
        + Bp * D * out_itemsize            # output write
    )

    out = pl.pallas_call(
        _category_kernel,
        out_shape=jax.ShapeDtypeStruct((Bp, D), out_dtype),
        grid_spec=pl.GridSpec(
            grid=(n_tiles,),
            in_specs=[
                pl.BlockSpec((bt, n_objects), lambda b: (b, 0)),
                pl.BlockSpec((n_objects, D), lambda b: (0, 0)),  # constant -> DMA'd once
            ],
            out_specs=pl.BlockSpec((bt, D), lambda b: (b, 0)),
        ),
        compiler_params=pltpu.CompilerParams(
            dimension_semantics=("parallel",),  # independent batch tiles (megacore)
        ),
        cost_estimate=pl.CostEstimate(
            flops=flops, transcendentals=0, bytes_accessed=bytes_accessed
        ),
    )(x, w_eff)

    return out[:B]


def _reference_forward(x, object_embeddings, morphism_matrices, functor_weights):
    obj = x @ object_embeddings
    w = jax.nn.softmax(functor_weights, axis=0)
    out = jnp.zeros_like(obj)
    for i in range(morphism_matrices.shape[0]):
        out = out + w[i] * (obj @ morphism_matrices[i])
    return out


if __name__ == "__main__":
    # Small, module-consistent shapes (D=64 is fixed by the module).
    batch = 8
    n_objects = 32
    n_morphisms = 4
    D = 64

    key = jax.random.PRNGKey(0)
    k_x, k_e, k_m, k_w = jax.random.split(key, 4)

    x = jax.random.normal(k_x, (batch, n_objects), dtype=jnp.float32)
    object_embeddings = jax.random.normal(k_e, (n_objects, D), dtype=jnp.float32)
    morphism_matrices = jax.random.normal(k_m, (n_morphisms, D, D), dtype=jnp.float32)
    functor_weights = jax.random.normal(k_w, (n_morphisms,), dtype=jnp.float32)

    out = category_theory_forward(
        x, object_embeddings, morphism_matrices, functor_weights
    )
    out = jax.block_until_ready(out)

    ref = _reference_forward(
        x, object_embeddings, morphism_matrices, functor_weights
    )
    assert out.shape == (batch, D)
    assert jnp.allclose(out, ref, atol=1e-3, rtol=1e-3)

    print("KERNEL_OK")
</pallas_src>

<mosaic_0001>
module attributes {stable_mosaic.version = 11 : i64} {
  func.func @_category_kernel(%arg0: i32, %arg1: memref<8x32xf32, #tpu.memory_space<vmem>>, %arg2: memref<32x64xf32, #tpu.memory_space<vmem>>, %arg3: memref<8x64xf32, #tpu.memory_space<vmem>>) attributes {dimension_semantics = [#tpu.dimension_semantics<parallel>], iteration_bounds = array<i64: 1>, scalar_prefetch = 0 : i64, scratch_operands = 0 : i64, tpu.core_type = #tpu.core_type<tc>, window_params = [{transform_indices = @transform_0, window_bounds = array<i64: 8, 32>}, {pipeline_mode = #tpu.pipeline_mode<synchronous>, transform_indices = @transform_1, window_bounds = array<i64: 32, 64>}, {transform_indices = @transform_2, window_bounds = array<i64: 8, 64>}]} {
    %c0 = arith.constant 0 : index
    %c0_0 = arith.constant 0 : index
    %0 = vector.load %arg1[%c0, %c0_0] : memref<8x32xf32, #tpu.memory_space<vmem>>, vector<8x32xf32>
    %c0_1 = arith.constant 0 : index
    %c0_2 = arith.constant 0 : index
    %1 = vector.load %arg2[%c0_1, %c0_2] : memref<32x64xf32, #tpu.memory_space<vmem>>, vector<32x64xf32>
    %cst = arith.constant dense<0.000000e+00> : vector<8x64xf32>
    %2 = tpu.matmul %0, %1, %cst {dimension_numbers = #tpu.dot_dimension_numbers<[1], [0], [0], [1], [0, 0, 1, 1], [], []>} : vector<8x32xf32>, vector<32x64xf32>, vector<8x64xf32> -> vector<8x64xf32>
    %c0_3 = arith.constant 0 : index
    %c0_4 = arith.constant 0 : index
    %3 = vector.load %arg3[%c0_3, %c0_4] : memref<8x64xf32, #tpu.memory_space<vmem>>, vector<8x64xf32>
    tpu.vector_store %arg3[%c0_3, %c0_4], %2 {strides = array<i32>} : memref<8x64xf32, #tpu.memory_space<vmem>>, vector<8x64xf32>,
    return
  }
  func.func @transform_0(%arg0: i32) -> (i32, i32) {
    %c0_i32 = arith.constant 0 : i32
    %c0_i32_0 = arith.constant 0 : i32
    return %arg0, %c0_i32 : i32, i32
  }
  func.func @transform_1(%arg0: i32) -> (i32, i32) {
    %c0_i32 = arith.constant 0 : i32
    %c0_i32_0 = arith.constant 0 : i32
    %c0_i32_1 = arith.constant 0 : i32
    return %c0_i32, %c0_i32_0 : i32, i32
  }
  func.func @transform_2(%arg0: i32) -> (i32, i32) {
    %c0_i32 = arith.constant 0 : i32
    %c0_i32_0 = arith.constant 0 : i32
    return %arg0, %c0_i32 : i32, i32
  }
}

</mosaic_0001>

<llo_original>
// kernel: tpu_custom_call.1
$region0: #{tpu_custom_call.1}
  #allocation0 [shape = 'u32[]', space=smem, size = 0x4, offset = 0x4, fixed_abs, tag = 'smem constant byte address 0x4 - core index']
  #allocation1 [shape = 'u32[144,128]{1,0:T(1,128)}', space=vmem, size = 0x12000, scoped, tag = 'internal scratch']
  %s0 = inlined_call_operand.hbm [shape: f32[8,32], index: 0, kind: input, shape index: {}]
  %s1 = inlined_call_operand.hbm [shape: f32[32,64], index: 1, kind: input, shape index: {}]
  %s2 = inlined_call_operand.hbm [shape: f32[8,64], index: 2, kind: output, shape index: {}]
  %s3 = sld [smem:[#allocation0]]
  $region26: #{tpu_custom_call.1} parent=0
    _
  %s5 = ssub.s32 1, %s3
  %s6 = scalar_select 0, %s5, %s3
  $region1: #{tpu_custom_call.1} parent=0
    #allocation2 [shape = 'u8[4096]{0}', space=vmem, size = 0x1000, scoped, tag = 'input window, operand 0, single buffered']
    #allocation3 [shape = 's32[1]{0}', space=sflag, size = 0x4, scoped, tag = 'scoped memory for tpu_custom_call.1']
    #allocation4 [shape = 's32[1]{0}', space=sflag, size = 0x4, scoped, tag = 'scoped memory for tpu_custom_call.1']
    #allocation5 [shape = 'u8[16384]{0}', space=vmem, size = 0x4000, scoped, tag = 'input window, operand 1, single buffered']
    #allocation6 [shape = 's32[1]{0}', space=sflag, size = 0x4, scoped, tag = 'scoped memory for tpu_custom_call.1']
    #allocation7 [shape = 'u8[4096]{0}', space=vmem, size = 0x1000, scoped, tag = 'output window, operand 0, single buffered']
    %7 = vsyncpa [#allocation3], 0
    %8 = vsyncpa [#allocation6], 0
    %9 = vsyncpa [#allocation4], 0
    // Predicated region
    $region2: #{tpu_custom_call.1} parent=1 // pred_check
      _
    $region3: #{tpu_custom_call.1} parent=1 // pred_check_branch
      %11 = sbr.rel (0) target = $region5
    $region4: #{tpu_custom_call.1} parent=1 // pred_region
      %s13 = ssub.s32 128, 128
      %14 = vsyncadd [#allocation3], %s13
      %s16 = sshll.u32 [#allocation2], 4
      %s17 = int_to_ptr.vmem [resolvable:$true] %s16
      %19 = dma.hbm_to_vmem [thread:$0]  %s0, 128, %s17, [#allocation3]
    $region5: #{tpu_custom_call.1} parent=1 // pred_fallthru
      _
    // Predicated region
    $region6: #{tpu_custom_call.1} parent=1 // pred_check
      _
    $region7: #{tpu_custom_call.1} parent=1 // pred_check_branch
      %21 = sbr.rel (0) target = $region9
    $region8: #{tpu_custom_call.1} parent=1 // pred_region
      %s23 = ssub.s32 512, 512
      %24 = vsyncadd [#allocation6], %s23
      %s25 = sshll.u32 [#allocation5], 4
      %s26 = int_to_ptr.vmem [resolvable:$true] %s25
      %31 = dma.hbm_to_vmem [thread:$0]  %s1, 512, %s26, [#allocation6], 128, 128, 8
    $region9: #{tpu_custom_call.1} parent=1 // pred_fallthru
      _
    // Predicated region
    $region10: #{tpu_custom_call.1} parent=1 // pred_check
      _
    $region11: #{tpu_custom_call.1} parent=1 // pred_check_branch
      %33 = sbr.rel (0) target = $region13
    $region12: #{tpu_custom_call.1} parent=1 // pred_region
      %34 = dma.done [#allocation3], 128
    $region13: #{tpu_custom_call.1} parent=1 // pred_fallthru
      _
    // Predicated region
    $region14: #{tpu_custom_call.1} parent=1 // pred_check
      _
    $region15: #{tpu_custom_call.1} parent=1 // pred_check_branch
      %36 = sbr.rel (0) target = $region17
    $region16: #{tpu_custom_call.1} parent=1 // pred_region
      %37 = dma.done [#allocation6], 512
    $region17: #{tpu_custom_call.1} parent=1 // pred_fallthru
      _
    %v38 = vld [vmem:[#allocation2] sm:$0xff]
    %v39 = vld [vmem:[#allocation5] sm:$0xff]
    %v40 = vld [vmem:[#allocation5 + $0x8] sm:$0xff]
    %v41 = vld [vmem:[#allocation5 + $0x10] sm:$0xff]
    %v42 = vld [vmem:[#allocation5 + $0x18] sm:$0xff]
    %vm43 = vcmask 261120
    %v45 = vsel %vm43, %v38, 0
    %47 = vmatprep.subr.mxu0 0.0
    %48 = vmatpush1.msra.mxu0 0.0
    %49 = vmatprep.subr.mxu0 0.0
    %50 = vmatpush1.msra.mxu0 0.0
    %51 = vmatprep.subr.mxu0 0.0
    %52 = vmatpush1.msra.mxu0 0.0
    %53 = vmatprep.subr.mxu0 0.0
    %54 = vmatpush1.msra.mxu0 0.0
    %55 = vmatprep.subr.mxu0 0.0
    %56 = vmatpush1.msra.mxu0 0.0
    %57 = vmatprep.subr.mxu0 0.0
    %58 = vmatpush1.msra.mxu0 0.0
    %59 = vmatprep.subr.mxu0 0.0
    %60 = vmatpush1.msra.mxu0 0.0
    %61 = vmatprep.subr.mxu0 0.0
    %62 = vmatpush1.msra.mxu0 0.0
    %63 = vmatprep.subr.mxu0 0.0
    %64 = vmatpush1.msra.mxu0 0.0
    %65 = vmatprep.subr.mxu0 0.0
    %66 = vmatpush1.msra.mxu0 0.0
    %67 = vmatprep.subr.mxu0 0.0
    %68 = vmatpush1.msra.mxu0 0.0
    %69 = vmatprep.subr.mxu0 0.0
    %70 = vmatpush1.msra.mxu0 0.0
    %71 = vmatprep.subr.mxu0 0.0
    %72 = vmatpush1.msra.mxu0 %v42
    %73 = vmatprep.subr.mxu0 0.0
    %74 = vmatpush1.msra.mxu0 %v41
    %75 = vmatprep.subr.mxu0 0.0
    %76 = vmatpush1.msra.mxu0 %v40
    %77 = vmatprep.subr.mxu0 0.0
    %78 = vmatpush1.msra.mxu0 %v39
    %79 = vmatprep.subr.mxu0 0.0
    %80 = vmatpush2.msra.mxu0 0.0
    %81 = vmatprep.subr.mxu0 0.0
    %82 = vmatpush2.msra.mxu0 0.0
    %83 = vmatprep.subr.mxu0 0.0
    %84 = vmatpush2.msra.mxu0 0.0
    %85 = vmatprep.subr.mxu0 0.0
    %86 = vmatpush2.msra.mxu0 0.0
    %87 = vmatprep.subr.mxu0 0.0
    %88 = vmatpush2.msra.mxu0 0.0
    %89 = vmatprep.subr.mxu0 0.0
    %90 = vmatpush2.msra.mxu0 0.0
    %91 = vmatprep.subr.mxu0 0.0
    %92 = vmatpush2.msra.mxu0 0.0
    %93 = vmatprep.subr.mxu0 0.0
    %94 = vmatpush2.msra.mxu0 0.0
    %95 = vmatprep.subr.mxu0 0.0
    %96 = vmatpush2.msra.mxu0 0.0
    %97 = vmatprep.subr.mxu0 0.0
    %98 = vmatpush2.msra.mxu0 0.0
    %99 = vmatprep.subr.mxu0 0.0
    %100 = vmatpush2.msra.mxu0 0.0
    %101 = vmatprep.subr.mxu0 0.0
    %102 = vmatpush2.msra.mxu0 0.0
    %103 = vmatprep.subr.mxu0 0.0
    %104 = vmatpush2.msra.mxu0 0.0
    %105 = vmatprep.subr.mxu0 0.0
    %106 = vmatpush2.msra.mxu0 0.0
    %107 = vmatprep.subr.mxu0 0.0
    %108 = vmatpush2.msra.mxu0 0.0
    %109 = vmatprep.subr.mxu0 0.0
    %110 = vmatpush2.msra.mxu0 0.0
    %111 = vmatprep.mubr.f32.mxu0 0.0
    %112 = vmatmul.mubr.f32.gmra.mxu0 %v45
    %v113 = vpop.f32.mrf.mxu0
    %v114 = vadd.f32 0.0, %v113
    %v115 = vpop.f32.mrf.mxu0
    %116 = vdwg.mxu0
    %vm117 = vcmask 523264
    %118 = vst.msk [vmem:[#allocation7] sm:$0xff] %vm117, %v114
    // Predicated region
    $region18: #{tpu_custom_call.1} parent=1 // pred_check
      _
    $region19: #{tpu_custom_call.1} parent=1 // pred_check_branch
      %120 = sbr.rel (0) target = $region21
    $region20: #{tpu_custom_call.1} parent=1 // pred_region
      %s122 = ssub.s32 128, 128
      %123 = vsyncadd [#allocation4], %s122
      %s125 = sshll.u32 [#allocation7], 4
      %s126 = int_to_ptr.vmem [resolvable:$true] %s125
      %128 = dma.vmem_to_hbm [thread:$0]  %s126, 128, %s2, [#allocation4]
    $region21: #{tpu_custom_call.1} parent=1 // pred_fallthru
      _
    // Predicated region
    $region22: #{tpu_custom_call.1} parent=1 // pred_check
      _
    $region23: #{tpu_custom_call.1} parent=1 // pred_check_branch
      %130 = sbr.rel (0) target = $region25
    $region24: #{tpu_custom_call.1} parent=1 // pred_region
      %131 = dma.done [#allocation4], 128
    $region25: #{tpu_custom_call.1} parent=1 // pred_fallthru
      _
    %132 = vsyncpa [#allocation3], 1
    %133 = vsyncpa [#allocation6], 1
    %134 = vsyncpa [#allocation4], 1

</llo_original>
